<compile_context>
chip_gen: v5e
topology: v5e:2x2
jax: 0.10.0
libtpu: 0.0.40
codegen_flags: <defaults>
</compile_context>

<pallas_src>
import jax
import jax.numpy as jnp
from jax.experimental import pallas as pl
from jax.experimental.pallas import tpu as pltpu

EPS = 1e-5                 # nn.InstanceNorm1d default eps
ONEBYONE = 4               # ONEBYONECHANNELS in the PyTorch module
_LANE = 128                # vreg lane width
_SUB = 8                   # f32 sublane width
_MXU_DTYPE = jnp.float32   # flip to jnp.bfloat16 on v5e/v6e/v7x for ~2-3x MXU throughput


def _rup(x, m):
    return ((x + m - 1) // m) * m


def _is_two_tensorcore_chip():
    """v7x (and v4/v5p megacore) expose 2 TensorCores per device; v5e/v6e have 1."""
    try:
        kind = jax.devices()[0].device_kind.lower()
    except Exception:
        return False
    return any(tag in kind for tag in ("v7", "7x", "v4", "v5p"))


def _pick_batch_tile(n, two_tc):
    """Power-of-two batch tile (<= 8, so output rows pad to one full sublane tile).

    Single-TC chips: one grid step for n <= 8 (each step costs ~0.35us of overhead).
    Two-TC chips: keep >= 2 'parallel' grid steps so both TensorCores get work.
    """
    if n <= 1:
        return 1
    cap = min(_SUB, (n + 1) // 2 if two_tc else n)
    bt = 1
    while bt * 2 <= cap:
        bt *= 2
    return bt


def _gelu_exact(x):
    # Exact (erf-based) GELU matching torch.nn.functional.gelu's default, via the
    # Abramowitz-Stegun 7.1.26 rational approximation.  The divide runs on the EUP
    # (pl.reciprocal approx) so it costs no VALU slots.
    z = x * 0.7071067811865476
    az = jnp.abs(z)
    t = pl.reciprocal(1.0 + 0.3275911 * az, approx=True)
    poly = ((((1.061405429 * t - 1.453152027) * t + 1.421413741) * t
             - 0.284496736) * t + 0.254829592) * t
    erf_abs = 1.0 - poly * jnp.exp(-az * az)
    erf = jnp.where(z >= 0.0, erf_abs, -erf_abs)
    return 0.5 * x * (1.0 + erf)


def _make_alexnet_kernel(n_blocks, kern_sizes, b_tile, l_true, lp, mxu_dtype):
    """Whole-network kernel: blocks -> 1x1 conv -> GELU -> flatten -> logits."""
    max_shift = 0
    for k in kern_sizes:
        padl = (k - 1) // 2
        max_shift = max(max_shift, padl, (k - 1) - padl)
    need_valid = lp > l_true                     # true length < padded lane count
    need_tap_masks = (lp - l_true) < max_shift   # only when rolls can wrap into valid lanes

    def kernel(x_ref, *refs):
        conv_w_refs = refs[:n_blocks]
        w1x1_ref, b1x1_ref, wh_ref, bh_ref, o_ref = refs[n_blocks:]

        inv_l = 1.0 / l_true
        if need_valid or need_tap_masks:
            lane = jax.lax.broadcasted_iota(jnp.int32, (1, lp), 1)
        valid = (lane < l_true) if need_valid else None

        # Tap masks only when L is (nearly) a multiple of 128; otherwise the zeroed
        # padded lanes produced by inorm_relu make the roll wrap-in harmless.
        tap_mask = {}
        if need_tap_masks:
            for ksz in kern_sizes:
                padl = (ksz - 1) // 2
                for k in range(ksz):
                    s = padl - k
                    if s != 0 and s not in tap_mask:
                        tap_mask[s] = (lane >= s) if s > 0 else (lane < l_true + s)

        def inorm_relu(h):                       # (C, LP) -> (C, LP), padded lanes -> 0
            # InstanceNorm1d (affine=False, biased variance) over the true L lanes only.
            if need_valid:
                hm = jnp.where(valid, h, 0.0)
                mean = jnp.sum(hm, axis=-1, keepdims=True) * inv_l
                hc = jnp.where(valid, h - mean, 0.0)
            else:
                mean = jnp.sum(h, axis=-1, keepdims=True) * inv_l
                hc = h - mean
            var = jnp.sum(hc * hc, axis=-1, keepdims=True) * inv_l
            return jnp.maximum(hc * jax.lax.rsqrt(var + EPS), 0.0)

        def tap_stack(h, ksz):                   # (Cin_p, LP) -> (K*Cin_p, LP)
            # K shifted copies stacked along the contraction axis; shifts on the XLU.
            # pad=(k-1)//2 matches torch padding='same' (extra zero on the right for even k).
            padl = (ksz - 1) // 2
            taps = []
            for k in range(ksz):
                s = padl - k
                if s == 0:
                    taps.append(h)
                else:
                    r = pltpu.roll(h, s % lp, axis=1)
                    if need_tap_masks:
                        r = jnp.where(tap_mask[s], r, 0.0)
                    taps.append(r)
            return taps[0] if ksz == 1 else jnp.concatenate(taps, axis=0)

        # ---- conv blocks: per-batch inorm/relu/taps (VPU/XLU), ONE wide MXU matmul/layer ----
        h = [x_ref[b] for b in range(b_tile)]            # each (C0_p, LP)
        for i, ksz in enumerate(kern_sizes):
            stacks = [tap_stack(inorm_relu(h[b]), ksz) for b in range(b_tile)]
            big = stacks[0] if b_tile == 1 else jnp.concatenate(stacks, axis=1)
            conv = jnp.dot(conv_w_refs[i][...],          # (Cout_p, K*Cin_p)
                           big.astype(mxu_dtype),        # (K*Cin_p, b_tile*LP)
                           preferred_element_type=jnp.float32)
            h = [conv[:, b * lp:(b + 1) * lp] for b in range(b_tile)]  # 128-aligned slices

        # ---- 1x1 conv (+bias) + exact GELU, batched over the lane axis ----
        hb = h[0] if b_tile == 1 else jnp.concatenate(h, axis=1)       # (Clast_p, b_tile*LP)
        a = jnp.dot(w1x1_ref[...], hb.astype(mxu_dtype),
                    preferred_element_type=jnp.float32) + b1x1_ref[...]
        g = _gelu_exact(a)                                             # (C1x1_p, b_tile*LP)

        # ---- flatten(start_dim=1) + Linear: ONE (8, ONEBYONE*LP) x (ONEBYONE*LP, OUT_p) dot.
        # Padded lanes / padded batch rows carry zero weight, so garbage never reaches logits.
        rows = []
        for b in range(b_tile):
            gb = g[:, b * lp:(b + 1) * lp]                             # (C1x1_p, LP)
            rows.append(jnp.concatenate(
                [gb[c:c + 1, :] for c in range(ONEBYONE)], axis=1))    # (1, ONEBYONE*LP)
        if b_tile < _SUB:                                              # pad to full sublane tile
            rows.append(jnp.zeros((_SUB - b_tile, ONEBYONE * lp), jnp.float32))
        lhs = jnp.concatenate(rows, axis=0)                            # (8, ONEBYONE*LP)
        logits = jnp.dot(lhs.astype(mxu_dtype), wh_ref[...],
                         preferred_element_type=jnp.float32) + bh_ref[...]
        o_ref[0] = logits.astype(o_ref.dtype)                          # full (8, OUT_p) store

    return kernel


def _prepare_params(params, kern_sizes, out_shape, l):
    """Pad + pre-fuse all weights ONCE (hoisted out of the per-call path)."""
    conv_ws = params["conv_ws"]
    c_true = [conv_ws[0].shape[1]] + [w.shape[0] for w in conv_ws]
    c_pad = [_rup(c, _SUB) for c in c_true]
    lp = _rup(l, _LANE)
    outp = _rup(out_shape, _LANE)
    c1x1p = _rup(ONEBYONE, _SUB)
    f32 = jnp.float32

    fused = []
    for i, w in enumerate(conv_ws):
        cout, cin, k = w.shape
        wp = jnp.zeros((c_pad[i + 1], k, c_pad[i]), f32)
        wp = wp.at[:cout, :, :cin].set(jnp.transpose(w, (0, 2, 1)))
        fused.append(wp.reshape(c_pad[i + 1], k * c_pad[i]).astype(_MXU_DTYPE))

    w1x1 = jnp.zeros((c1x1p, c_pad[-1]), f32).at[:ONEBYONE, :c_true[-1]].set(
        params["w_1x1"]).astype(_MXU_DTYPE)
    b1x1 = jnp.zeros((c1x1p, 1), f32).at[:ONEBYONE, 0].set(params["b_1x1"])

    # Fused logits weight: wh[c*LP + l, o] = w_logits[o, c*L + l]  (zeros for l >= L).
    wl3 = params["w_logits"].reshape(out_shape, ONEBYONE, l)
    wh = jnp.zeros((ONEBYONE, lp, outp), f32).at[:, :l, :out_shape].set(
        jnp.transpose(wl3, (1, 2, 0)))
    wh = wh.reshape(ONEBYONE * lp, outp).astype(_MXU_DTYPE)
    bh = jnp.zeros((1, outp), f32).at[0, :out_shape].set(params["b_logits"])

    return dict(conv_ws=tuple(fused), w1x1=w1x1, b1x1=b1x1, wh=wh, bh=bh,
                c_pad=tuple(c_pad), lp=lp, outp=outp)


def make_alexnet_forward(params, kern_sizes, out_shape, l):
    """Returns a jitted forward(x: (N, C_in, L) f32) -> (N, out_shape) f32."""
    kern_sizes = tuple(int(k) for k in kern_sizes)
    packed = _prepare_params(params, kern_sizes, out_shape, l)
    two_tc = _is_two_tensorcore_chip()
    n_blocks = len(packed["conv_ws"])
    lp, outp, c_pad = packed["lp"], packed["outp"], packed["c_pad"]

    @jax.jit
    def forward(x):
        n, c_in, _ = x.shape
        b_tile = _pick_batch_tile(n, two_tc)
        n_padded = _rup(n, b_tile)
        n_tiles = n_padded // b_tile

        xp = jnp.zeros((n_padded, c_pad[0], lp), jnp.float32)
        xp = xp.at[:n, :c_in, :l].set(x.astype(jnp.float32))

        kernel = _make_alexnet_kernel(n_blocks, kern_sizes, b_tile, l, lp, _MXU_DTYPE)

        in_specs = [pl.BlockSpec((b_tile, c_pad[0], lp), lambda i: (i, 0, 0))]
        for w in packed["conv_ws"]:
            in_specs.append(pl.BlockSpec(w.shape, lambda i: (0, 0)))
        in_specs += [
            pl.BlockSpec(packed["w1x1"].shape, lambda i: (0, 0)),
            pl.BlockSpec(packed["b1x1"].shape, lambda i: (0, 0)),
            pl.BlockSpec(packed["wh"].shape, lambda i: (0, 0)),
            pl.BlockSpec(packed["bh"].shape, lambda i: (0, 0)),
        ]

        out = pl.pallas_call(
            kernel,
            out_shape=jax.ShapeDtypeStruct((n_tiles, _SUB, outp), jnp.float32),
            grid_spec=pl.GridSpec(
                grid=(n_tiles,),
                in_specs=in_specs,
                out_specs=pl.BlockSpec((1, _SUB, outp), lambda i: (i, 0, 0)),
            ),
            compiler_params=pltpu.CompilerParams(
                dimension_semantics=("parallel",),
                vmem_limit_bytes=32 * 1024 * 1024,   # headroom-safe on v5e/v6e/v7x
            ),
        )(xp, *packed["conv_ws"], packed["w1x1"], packed["b1x1"],
          packed["wh"], packed["bh"])

        out = out[:, :b_tile, :].reshape(n_padded, outp)
        return out[:n, :out_shape]

    return forward


def init_alexnet_params(key, inp_channels, conv_channels, kern_sizes, out_shape, l):
    """Deterministic synthetic weights (no checkpoint load), fan-in scaled."""
    keys = jax.random.split(key, len(conv_channels) + 4)
    conv_ws = []
    cin = inp_channels
    for i, (cout, k) in enumerate(zip(conv_channels, kern_sizes)):
        conv_ws.append(jax.random.normal(keys[i], (cout, cin, k), jnp.float32)
                       / jnp.sqrt(jnp.float32(cin * k)))
        cin = cout
    w_1x1 = jax.random.normal(keys[-4], (ONEBYONE, cin), jnp.float32) / jnp.sqrt(
        jnp.float32(cin))
    b_1x1 = 0.1 * jax.random.normal(keys[-3], (ONEBYONE,), jnp.float32)
    w_logits = jax.random.normal(keys[-2], (out_shape, ONEBYONE * l), jnp.float32
                                 ) / jnp.sqrt(jnp.float32(ONEBYONE * l))
    b_logits = 0.1 * jax.random.normal(keys[-1], (out_shape,), jnp.float32)
    return dict(conv_ws=conv_ws, w_1x1=w_1x1, b_1x1=b_1x1,
                w_logits=w_logits, b_logits=b_logits)


def alexnet_reference(x, params):
    """Pure-JAX reference mirroring the PyTorch forward."""
    h = x
    for w in params["conv_ws"]:
        mean = h.mean(-1, keepdims=True)
        var = ((h - mean) ** 2).mean(-1, keepdims=True)
        h = jax.nn.relu((h - mean) * jax.lax.rsqrt(var + EPS))
        h = jax.lax.conv_general_dilated(
            h, w, window_strides=(1,), padding="SAME",
            dimension_numbers=("NCH", "OIH", "NCH"))
    a = jnp.einsum("oc,ncl->nol", params["w_1x1"], h) + params["b_1x1"][None, :, None]
    g = jax.nn.gelu(a, approximate=False)          # torch F.gelu default = exact erf
    flat = g.reshape(g.shape[0], -1)
    return flat @ params["w_logits"].T + params["b_logits"]


if __name__ == "__main__":
    key = jax.random.PRNGKey(0)

    N, C_IN, L = 2, 1, 16                  # AlexNet default inp_channels=1
    conv_channels = (4, 8)
    kern_sizes = (3, 3)
    out_shape = 10

    params = init_alexnet_params(key, C_IN, conv_channels, kern_sizes, out_shape, L)
    x = jax.random.normal(jax.random.fold_in(key, 123), (N, C_IN, L), jnp.float32)

    forward = make_alexnet_forward(params, kern_sizes, out_shape, L)
    out = forward(x)
    jax.block_until_ready(out)

    ref = alexnet_reference(x, params)
    assert out.shape == (N, out_shape)
    # 3e-3 covers the EUP approximate reciprocal inside GELU (f32 MXU inputs);
    # bf16 MXU inputs accumulate ~1e-2-1e-1 error through the instance norms.
    tol = 3e-3 if _MXU_DTYPE == jnp.float32 else 1.5e-1
    max_err = float(jnp.max(jnp.abs(out - ref)))
    assert jnp.allclose(out, ref, atol=tol, rtol=tol), max_err

    print("KERNEL_OK")
</pallas_src>

<mosaic_0001>
module attributes {stable_mosaic.version = 11 : i64} {
  func.func @kernel(%arg0: i32, %arg1: memref<2x8x128xf32, #tpu.memory_space<vmem>>, %arg2: memref<8x24xf32, #tpu.memory_space<vmem>>, %arg3: memref<8x24xf32, #tpu.memory_space<vmem>>, %arg4: memref<8x8xf32, #tpu.memory_space<vmem>>, %arg5: memref<8x1xf32, #tpu.memory_space<vmem>>, %arg6: memref<512x128xf32, #tpu.memory_space<vmem>>, %arg7: memref<1x128xf32, #tpu.memory_space<vmem>>, %arg8: memref<1x8x128xf32, #tpu.memory_space<vmem>>) attributes {dimension_semantics = [#tpu.dimension_semantics<parallel>], iteration_bounds = array<i64: 1>, scalar_prefetch = 0 : i64, scratch_operands = 0 : i64, tpu.core_type = #tpu.core_type<tc>, window_params = [{transform_indices = @transform_0, window_bounds = array<i64: 2, 8, 128>}, {pipeline_mode = #tpu.pipeline_mode<synchronous>, transform_indices = @transform_1, window_bounds = array<i64: 8, 24>}, {pipeline_mode = #tpu.pipeline_mode<synchronous>, transform_indices = @transform_2, window_bounds = array<i64: 8, 24>}, {pipeline_mode = #tpu.pipeline_mode<synchronous>, transform_indices = @transform_3, window_bounds = array<i64: 8, 8>}, {pipeline_mode = #tpu.pipeline_mode<synchronous>, transform_indices = @transform_4, window_bounds = array<i64: 8, 1>}, {pipeline_mode = #tpu.pipeline_mode<synchronous>, transform_indices = @transform_5, window_bounds = array<i64: 512, 128>}, {pipeline_mode = #tpu.pipeline_mode<synchronous>, transform_indices = @transform_6, window_bounds = array<i64: 1, 128>}, {transform_indices = @transform_7, window_bounds = array<i64: 1, 8, 128>}]} {
    %0 = tpu.iota {dimensions = array<i32: 1>} : vector<1x128xi32>
    %c16_i32 = arith.constant 16 : i32
    %1 = vector.broadcast %c16_i32 : i32 to vector<1x128xi32>
    %2 = arith.cmpi slt, %0, %1 : vector<1x128xi32>
    %c0 = arith.constant 0 : index
    %c0_0 = arith.constant 0 : index
    %c0_1 = arith.constant 0 : index
    %3 = vector.load %arg1[%c0, %c0_0, %c0_1] : memref<2x8x128xf32, #tpu.memory_space<vmem>>, vector<1x8x128xf32>
    %4 = vector.shape_cast %3 : vector<1x8x128xf32> to vector<8x128xf32>
    %c1 = arith.constant 1 : index
    %c0_2 = arith.constant 0 : index
    %c0_3 = arith.constant 0 : index
    %5 = vector.load %arg1[%c1, %c0_2, %c0_3] : memref<2x8x128xf32, #tpu.memory_space<vmem>>, vector<1x8x128xf32>
    %6 = vector.shape_cast %5 : vector<1x8x128xf32> to vector<8x128xf32>
    %cst = arith.constant 0.000000e+00 : f32
    %7 = vector.shape_cast %2 : vector<1x128xi1> to vector<1x128xi1>
    %8 = vector.broadcast %7 : vector<1x128xi1> to vector<8x128xi1>
    %9 = vector.broadcast %cst : f32 to vector<8x128xf32>
    %10 = arith.select %8, %4, %9 : vector<8x128xi1>, vector<8x128xf32>
    %cst_4 = arith.constant dense<0.000000e+00> : vector<8xf32>
    %11 = vector.multi_reduction <add>, %10, %cst_4 [1] : vector<8x128xf32> to vector<8xf32>
    %12 = vector.shape_cast %11 : vector<8xf32> to vector<8x1xf32>
    %cst_5 = arith.constant 6.250000e-02 : f32
    %13 = vector.broadcast %cst_5 : f32 to vector<8x1xf32>
    %14 = arith.mulf %12, %13 : vector<8x1xf32>
    %15 = vector.broadcast %14 : vector<8x1xf32> to vector<8x128xf32>
    %16 = arith.subf %4, %15 : vector<8x128xf32>
    %cst_6 = arith.constant 0.000000e+00 : f32
    %17 = vector.shape_cast %2 : vector<1x128xi1> to vector<1x128xi1>
    %18 = vector.broadcast %17 : vector<1x128xi1> to vector<8x128xi1>
    %19 = vector.broadcast %cst_6 : f32 to vector<8x128xf32>
    %20 = arith.select %18, %16, %19 : vector<8x128xi1>, vector<8x128xf32>
    %21 = arith.mulf %20, %20 : vector<8x128xf32>
    %cst_7 = arith.constant dense<0.000000e+00> : vector<8xf32>
    %22 = vector.multi_reduction <add>, %21, %cst_7 [1] : vector<8x128xf32> to vector<8xf32>
    %23 = vector.shape_cast %22 : vector<8xf32> to vector<8x1xf32>
    %cst_8 = arith.constant 6.250000e-02 : f32
    %24 = vector.broadcast %cst_8 : f32 to vector<8x1xf32>
    %25 = arith.mulf %23, %24 : vector<8x1xf32>
    %cst_9 = arith.constant 9.99999974E-6 : f32
    %26 = vector.broadcast %cst_9 : f32 to vector<8x1xf32>
    %27 = arith.addf %25, %26 : vector<8x1xf32>
    %28 = math.rsqrt %27 : vector<8x1xf32>
    %29 = vector.broadcast %28 : vector<8x1xf32> to vector<8x128xf32>
    %30 = arith.mulf %20, %29 : vector<8x128xf32>
    %cst_10 = arith.constant 0.000000e+00 : f32
    %31 = vector.broadcast %cst_10 : f32 to vector<8x128xf32>
    %32 = arith.maximumf %30, %31 : vector<8x128xf32>
    %c1_i32 = arith.constant 1 : i32
    %33 = tpu.dynamic_rotate %32 by %c1_i32 dim 1 : vector<8x128xf32>, i32 -> vector<8x128xf32>
    %c127_i32 = arith.constant 127 : i32
    %34 = tpu.dynamic_rotate %32 by %c127_i32 dim 1 : vector<8x128xf32>, i32 -> vector<8x128xf32>
    %35 = tpu.concatenate %33, %32, %34 in 0 : vector<8x128xf32>, vector<8x128xf32>, vector<8x128xf32> -> vector<24x128xf32>
    %cst_11 = arith.constant 0.000000e+00 : f32
    %36 = vector.shape_cast %2 : vector<1x128xi1> to vector<1x128xi1>
    %37 = vector.broadcast %36 : vector<1x128xi1> to vector<8x128xi1>
    %38 = vector.broadcast %cst_11 : f32 to vector<8x128xf32>
    %39 = arith.select %37, %6, %38 : vector<8x128xi1>, vector<8x128xf32>
    %cst_12 = arith.constant dense<0.000000e+00> : vector<8xf32>
    %40 = vector.multi_reduction <add>, %39, %cst_12 [1] : vector<8x128xf32> to vector<8xf32>
    %41 = vector.shape_cast %40 : vector<8xf32> to vector<8x1xf32>
    %cst_13 = arith.constant 6.250000e-02 : f32
    %42 = vector.broadcast %cst_13 : f32 to vector<8x1xf32>
    %43 = arith.mulf %41, %42 : vector<8x1xf32>
    %44 = vector.broadcast %43 : vector<8x1xf32> to vector<8x128xf32>
    %45 = arith.subf %6, %44 : vector<8x128xf32>
    %cst_14 = arith.constant 0.000000e+00 : f32
    %46 = vector.shape_cast %2 : vector<1x128xi1> to vector<1x128xi1>
    %47 = vector.broadcast %46 : vector<1x128xi1> to vector<8x128xi1>
    %48 = vector.broadcast %cst_14 : f32 to vector<8x128xf32>
    %49 = arith.select %47, %45, %48 : vector<8x128xi1>, vector<8x128xf32>
    %50 = arith.mulf %49, %49 : vector<8x128xf32>
    %cst_15 = arith.constant dense<0.000000e+00> : vector<8xf32>
    %51 = vector.multi_reduction <add>, %50, %cst_15 [1] : vector<8x128xf32> to vector<8xf32>
    %52 = vector.shape_cast %51 : vector<8xf32> to vector<8x1xf32>
    %cst_16 = arith.constant 6.250000e-02 : f32
    %53 = vector.broadcast %cst_16 : f32 to vector<8x1xf32>
    %54 = arith.mulf %52, %53 : vector<8x1xf32>
    %cst_17 = arith.constant 9.99999974E-6 : f32
    %55 = vector.broadcast %cst_17 : f32 to vector<8x1xf32>
    %56 = arith.addf %54, %55 : vector<8x1xf32>
    %57 = math.rsqrt %56 : vector<8x1xf32>
    %58 = vector.broadcast %57 : vector<8x1xf32> to vector<8x128xf32>
    %59 = arith.mulf %49, %58 : vector<8x128xf32>
    %cst_18 = arith.constant 0.000000e+00 : f32
    %60 = vector.broadcast %cst_18 : f32 to vector<8x128xf32>
    %61 = arith.maximumf %59, %60 : vector<8x128xf32>
    %c1_i32_19 = arith.constant 1 : i32
    %62 = tpu.dynamic_rotate %61 by %c1_i32_19 dim 1 : vector<8x128xf32>, i32 -> vector<8x128xf32>
    %c127_i32_20 = arith.constant 127 : i32
    %63 = tpu.dynamic_rotate %61 by %c127_i32_20 dim 1 : vector<8x128xf32>, i32 -> vector<8x128xf32>
    %64 = tpu.concatenate %62, %61, %63 in 0 : vector<8x128xf32>, vector<8x128xf32>, vector<8x128xf32> -> vector<24x128xf32>
    %65 = tpu.concatenate %35, %64 in 1 : vector<24x128xf32>, vector<24x128xf32> -> vector<24x256xf32>
    %c0_21 = arith.constant 0 : index
    %c0_22 = arith.constant 0 : index
    %66 = vector.load %arg2[%c0_21, %c0_22] : memref<8x24xf32, #tpu.memory_space<vmem>>, vector<8x24xf32>
    %cst_23 = arith.constant dense<0.000000e+00> : vector<8x256xf32>
    %67 = tpu.matmul %66, %65, %cst_23 {dimension_numbers = #tpu.dot_dimension_numbers<[1], [0], [0], [1], [0, 0, 1, 1], [], []>} : vector<8x24xf32>, vector<24x256xf32>, vector<8x256xf32> -> vector<8x256xf32>
    %68 = vector.extract_strided_slice %67 {offsets = [0, 0], sizes = [8, 128], strides = [1, 1]} : vector<8x256xf32> to vector<8x128xf32>
    %69 = vector.extract_strided_slice %67 {offsets = [0, 128], sizes = [8, 128], strides = [1, 1]} : vector<8x256xf32> to vector<8x128xf32>
    %cst_24 = arith.constant 0.000000e+00 : f32
    %70 = vector.shape_cast %2 : vector<1x128xi1> to vector<1x128xi1>
    %71 = vector.broadcast %70 : vector<1x128xi1> to vector<8x128xi1>
    %72 = vector.broadcast %cst_24 : f32 to vector<8x128xf32>
    %73 = arith.select %71, %68, %72 : vector<8x128xi1>, vector<8x128xf32>
    %cst_25 = arith.constant dense<0.000000e+00> : vector<8xf32>
    %74 = vector.multi_reduction <add>, %73, %cst_25 [1] : vector<8x128xf32> to vector<8xf32>
    %75 = vector.shape_cast %74 : vector<8xf32> to vector<8x1xf32>
    %cst_26 = arith.constant 6.250000e-02 : f32
    %76 = vector.broadcast %cst_26 : f32 to vector<8x1xf32>
    %77 = arith.mulf %75, %76 : vector<8x1xf32>
    %78 = vector.broadcast %77 : vector<8x1xf32> to vector<8x128xf32>
    %79 = arith.subf %68, %78 : vector<8x128xf32>
    %cst_27 = arith.constant 0.000000e+00 : f32
    %80 = vector.shape_cast %2 : vector<1x128xi1> to vector<1x128xi1>
    %81 = vector.broadcast %80 : vector<1x128xi1> to vector<8x128xi1>
    %82 = vector.broadcast %cst_27 : f32 to vector<8x128xf32>
    %83 = arith.select %81, %79, %82 : vector<8x128xi1>, vector<8x128xf32>
    %84 = arith.mulf %83, %83 : vector<8x128xf32>
    %cst_28 = arith.constant dense<0.000000e+00> : vector<8xf32>
    %85 = vector.multi_reduction <add>, %84, %cst_28 [1] : vector<8x128xf32> to vector<8xf32>
    %86 = vector.shape_cast %85 : vector<8xf32> to vector<8x1xf32>
    %cst_29 = arith.constant 6.250000e-02 : f32
    %87 = vector.broadcast %cst_29 : f32 to vector<8x1xf32>
    %88 = arith.mulf %86, %87 : vector<8x1xf32>
    %cst_30 = arith.constant 9.99999974E-6 : f32
    %89 = vector.broadcast %cst_30 : f32 to vector<8x1xf32>
    %90 = arith.addf %88, %89 : vector<8x1xf32>
    %91 = math.rsqrt %90 : vector<8x1xf32>
    %92 = vector.broadcast %91 : vector<8x1xf32> to vector<8x128xf32>
    %93 = arith.mulf %83, %92 : vector<8x128xf32>
    %cst_31 = arith.constant 0.000000e+00 : f32
    %94 = vector.broadcast %cst_31 : f32 to vector<8x128xf32>
    %95 = arith.maximumf %93, %94 : vector<8x128xf32>
    %c1_i32_32 = arith.constant 1 : i32
    %96 = tpu.dynamic_rotate %95 by %c1_i32_32 dim 1 : vector<8x128xf32>, i32 -> vector<8x128xf32>
    %c127_i32_33 = arith.constant 127 : i32
    %97 = tpu.dynamic_rotate %95 by %c127_i32_33 dim 1 : vector<8x128xf32>, i32 -> vector<8x128xf32>
    %98 = tpu.concatenate %96, %95, %97 in 0 : vector<8x128xf32>, vector<8x128xf32>, vector<8x128xf32> -> vector<24x128xf32>
    %cst_34 = arith.constant 0.000000e+00 : f32
    %99 = vector.shape_cast %2 : vector<1x128xi1> to vector<1x128xi1>
    %100 = vector.broadcast %99 : vector<1x128xi1> to vector<8x128xi1>
    %101 = vector.broadcast %cst_34 : f32 to vector<8x128xf32>
    %102 = arith.select %100, %69, %101 : vector<8x128xi1>, vector<8x128xf32>
    %cst_35 = arith.constant dense<0.000000e+00> : vector<8xf32>
    %103 = vector.multi_reduction <add>, %102, %cst_35 [1] : vector<8x128xf32> to vector<8xf32>
    %104 = vector.shape_cast %103 : vector<8xf32> to vector<8x1xf32>
    %cst_36 = arith.constant 6.250000e-02 : f32
    %105 = vector.broadcast %cst_36 : f32 to vector<8x1xf32>
    %106 = arith.mulf %104, %105 : vector<8x1xf32>
    %107 = vector.broadcast %106 : vector<8x1xf32> to vector<8x128xf32>
    %108 = arith.subf %69, %107 : vector<8x128xf32>
    %cst_37 = arith.constant 0.000000e+00 : f32
    %109 = vector.shape_cast %2 : vector<1x128xi1> to vector<1x128xi1>
    %110 = vector.broadcast %109 : vector<1x128xi1> to vector<8x128xi1>
    %111 = vector.broadcast %cst_37 : f32 to vector<8x128xf32>
    %112 = arith.select %110, %108, %111 : vector<8x128xi1>, vector<8x128xf32>
    %113 = arith.mulf %112, %112 : vector<8x128xf32>
    %cst_38 = arith.constant dense<0.000000e+00> : vector<8xf32>
    %114 = vector.multi_reduction <add>, %113, %cst_38 [1] : vector<8x128xf32> to vector<8xf32>
    %115 = vector.shape_cast %114 : vector<8xf32> to vector<8x1xf32>
    %cst_39 = arith.constant 6.250000e-02 : f32
    %116 = vector.broadcast %cst_39 : f32 to vector<8x1xf32>
    %117 = arith.mulf %115, %116 : vector<8x1xf32>
    %cst_40 = arith.constant 9.99999974E-6 : f32
    %118 = vector.broadcast %cst_40 : f32 to vector<8x1xf32>
    %119 = arith.addf %117, %118 : vector<8x1xf32>
    %120 = math.rsqrt %119 : vector<8x1xf32>
    %121 = vector.broadcast %120 : vector<8x1xf32> to vector<8x128xf32>
    %122 = arith.mulf %112, %121 : vector<8x128xf32>
    %cst_41 = arith.constant 0.000000e+00 : f32
    %123 = vector.broadcast %cst_41 : f32 to vector<8x128xf32>
    %124 = arith.maximumf %122, %123 : vector<8x128xf32>
    %c1_i32_42 = arith.constant 1 : i32
    %125 = tpu.dynamic_rotate %124 by %c1_i32_42 dim 1 : vector<8x128xf32>, i32 -> vector<8x128xf32>
    %c127_i32_43 = arith.constant 127 : i32
    %126 = tpu.dynamic_rotate %124 by %c127_i32_43 dim 1 : vector<8x128xf32>, i32 -> vector<8x128xf32>
    %127 = tpu.concatenate %125, %124, %126 in 0 : vector<8x128xf32>, vector<8x128xf32>, vector<8x128xf32> -> vector<24x128xf32>
    %128 = tpu.concatenate %98, %127 in 1 : vector<24x128xf32>, vector<24x128xf32> -> vector<24x256xf32>
    %c0_44 = arith.constant 0 : index
    %c0_45 = arith.constant 0 : index
    %129 = vector.load %arg3[%c0_44, %c0_45] : memref<8x24xf32, #tpu.memory_space<vmem>>, vector<8x24xf32>
    %cst_46 = arith.constant dense<0.000000e+00> : vector<8x256xf32>
    %130 = tpu.matmul %129, %128, %cst_46 {dimension_numbers = #tpu.dot_dimension_numbers<[1], [0], [0], [1], [0, 0, 1, 1], [], []>} : vector<8x24xf32>, vector<24x256xf32>, vector<8x256xf32> -> vector<8x256xf32>
    %131 = vector.extract_strided_slice %130 {offsets = [0, 0], sizes = [8, 128], strides = [1, 1]} : vector<8x256xf32> to vector<8x128xf32>
    %132 = vector.extract_strided_slice %130 {offsets = [0, 128], sizes = [8, 128], strides = [1, 1]} : vector<8x256xf32> to vector<8x128xf32>
    %133 = tpu.concatenate %131, %132 in 1 : vector<8x128xf32>, vector<8x128xf32> -> vector<8x256xf32>
    %c0_47 = arith.constant 0 : index
    %c0_48 = arith.constant 0 : index
    %134 = vector.load %arg4[%c0_47, %c0_48] : memref<8x8xf32, #tpu.memory_space<vmem>>, vector<8x8xf32>
    %cst_49 = arith.constant dense<0.000000e+00> : vector<8x256xf32>
    %135 = tpu.matmul %134, %133, %cst_49 {dimension_numbers = #tpu.dot_dimension_numbers<[1], [0], [0], [1], [0, 0, 1, 1], [], []>} : vector<8x8xf32>, vector<8x256xf32>, vector<8x256xf32> -> vector<8x256xf32>
    %c0_50 = arith.constant 0 : index
    %c0_51 = arith.constant 0 : index
    %136 = vector.load %arg5[%c0_50, %c0_51] : memref<8x1xf32, #tpu.memory_space<vmem>>, vector<8x1xf32>
    %137 = vector.broadcast %136 : vector<8x1xf32> to vector<8x256xf32>
    %138 = arith.addf %135, %137 : vector<8x256xf32>
    %cst_52 = arith.constant 0.707106769 : f32
    %139 = vector.broadcast %cst_52 : f32 to vector<8x256xf32>
    %140 = arith.mulf %138, %139 : vector<8x256xf32>
    %141 = math.absf %140 : vector<8x256xf32>
    %cst_53 = arith.constant 0.327591091 : f32
    %142 = vector.broadcast %cst_53 : f32 to vector<8x256xf32>
    %143 = arith.mulf %142, %141 : vector<8x256xf32>
    %cst_54 = arith.constant 1.000000e+00 : f32
    %144 = vector.broadcast %cst_54 : f32 to vector<8x256xf32>
    %145 = arith.addf %144, %143 : vector<8x256xf32>
    %146 = tpu.reciprocal %145 {approx = true} : vector<8x256xf32> -> vector<8x256xf32>
    %cst_55 = arith.constant 1.06140542 : f32
    %147 = vector.broadcast %cst_55 : f32 to vector<8x256xf32>
    %148 = arith.mulf %147, %146 : vector<8x256xf32>
    %cst_56 = arith.constant 1.45315206 : f32
    %149 = vector.broadcast %cst_56 : f32 to vector<8x256xf32>
    %150 = arith.subf %148, %149 : vector<8x256xf32>
    %151 = arith.mulf %150, %146 : vector<8x256xf32>
    %cst_57 = arith.constant 1.42141378 : f32
    %152 = vector.broadcast %cst_57 : f32 to vector<8x256xf32>
    %153 = arith.addf %151, %152 : vector<8x256xf32>
    %154 = arith.mulf %153, %146 : vector<8x256xf32>
    %cst_58 = arith.constant 0.284496725 : f32
    %155 = vector.broadcast %cst_58 : f32 to vector<8x256xf32>
    %156 = arith.subf %154, %155 : vector<8x256xf32>
    %157 = arith.mulf %156, %146 : vector<8x256xf32>
    %cst_59 = arith.constant 0.254829586 : f32
    %158 = vector.broadcast %cst_59 : f32 to vector<8x256xf32>
    %159 = arith.addf %157, %158 : vector<8x256xf32>
    %160 = arith.mulf %159, %146 : vector<8x256xf32>
    %cst_60 = arith.constant 0.000000e+00 : f32
    %161 = vector.broadcast %cst_60 : f32 to vector<8x256xf32>
    %162 = arith.subf %161, %141 : vector<8x256xf32>
    %163 = arith.mulf %162, %141 : vector<8x256xf32>
    %164 = math.exp %163 : vector<8x256xf32>
    %165 = arith.mulf %160, %164 : vector<8x256xf32>
    %cst_61 = arith.constant 1.000000e+00 : f32
    %166 = vector.broadcast %cst_61 : f32 to vector<8x256xf32>
    %167 = arith.subf %166, %165 : vector<8x256xf32>
    %cst_62 = arith.constant 0.000000e+00 : f32
    %168 = vector.broadcast %cst_62 : f32 to vector<8x256xf32>
    %169 = arith.cmpf oge, %140, %168 : vector<8x256xf32>
    %cst_63 = arith.constant 0.000000e+00 : f32
    %170 = vector.broadcast %cst_63 : f32 to vector<8x256xf32>
    %171 = arith.subf %170, %167 : vector<8x256xf32>
    %172 = arith.select %169, %167, %171 : vector<8x256xi1>, vector<8x256xf32>
    %cst_64 = arith.constant 5.000000e-01 : f32
    %173 = vector.broadcast %cst_64 : f32 to vector<8x256xf32>
    %174 = arith.mulf %173, %138 : vector<8x256xf32>
    %cst_65 = arith.constant 1.000000e+00 : f32
    %175 = vector.broadcast %cst_65 : f32 to vector<8x256xf32>
    %176 = arith.addf %175, %172 : vector<8x256xf32>
    %177 = arith.mulf %174, %176 : vector<8x256xf32>
    %178 = vector.extract_strided_slice %177 {offsets = [0, 0], sizes = [8, 128], strides = [1, 1]} : vector<8x256xf32> to vector<8x128xf32>
    %179 = vector.extract_strided_slice %178 {offsets = [0, 0], sizes = [1, 128], strides = [1, 1]} : vector<8x128xf32> to vector<1x128xf32>
    %180 = vector.extract_strided_slice %178 {offsets = [1, 0], sizes = [1, 128], strides = [1, 1]} : vector<8x128xf32> to vector<1x128xf32>
    %181 = vector.extract_strided_slice %178 {offsets = [2, 0], sizes = [1, 128], strides = [1, 1]} : vector<8x128xf32> to vector<1x128xf32>
    %182 = vector.extract_strided_slice %178 {offsets = [3, 0], sizes = [1, 128], strides = [1, 1]} : vector<8x128xf32> to vector<1x128xf32>
    %183 = tpu.concatenate %179, %180, %181, %182 in 1 : vector<1x128xf32>, vector<1x128xf32>, vector<1x128xf32>, vector<1x128xf32> -> vector<1x512xf32>
    %184 = vector.extract_strided_slice %177 {offsets = [0, 128], sizes = [8, 128], strides = [1, 1]} : vector<8x256xf32> to vector<8x128xf32>
    %185 = vector.extract_strided_slice %184 {offsets = [0, 0], sizes = [1, 128], strides = [1, 1]} : vector<8x128xf32> to vector<1x128xf32>
    %186 = vector.extract_strided_slice %184 {offsets = [1, 0], sizes = [1, 128], strides = [1, 1]} : vector<8x128xf32> to vector<1x128xf32>
    %187 = vector.extract_strided_slice %184 {offsets = [2, 0], sizes = [1, 128], strides = [1, 1]} : vector<8x128xf32> to vector<1x128xf32>
    %188 = vector.extract_strided_slice %184 {offsets = [3, 0], sizes = [1, 128], strides = [1, 1]} : vector<8x128xf32> to vector<1x128xf32>
    %189 = tpu.concatenate %185, %186, %187, %188 in 1 : vector<1x128xf32>, vector<1x128xf32>, vector<1x128xf32>, vector<1x128xf32> -> vector<1x512xf32>
    %cst_66 = arith.constant 0.000000e+00 : f32
    %190 = vector.broadcast %cst_66 : f32 to vector<6x512xf32>
    %191 = tpu.concatenate %183, %189, %190 in 0 : vector<1x512xf32>, vector<1x512xf32>, vector<6x512xf32> -> vector<8x512xf32>
    %c0_67 = arith.constant 0 : index
    %c0_68 = arith.constant 0 : index
    %192 = vector.load %arg6[%c0_67, %c0_68] : memref<512x128xf32, #tpu.memory_space<vmem>>, vector<512x128xf32>
    %cst_69 = arith.constant dense<0.000000e+00> : vector<8x128xf32>
    %193 = tpu.matmul %191, %192, %cst_69 {dimension_numbers = #tpu.dot_dimension_numbers<[1], [0], [0], [1], [0, 0, 1, 1], [], []>} : vector<8x512xf32>, vector<512x128xf32>, vector<8x128xf32> -> vector<8x128xf32>
    %c0_70 = arith.constant 0 : index
    %c0_71 = arith.constant 0 : index
    %194 = vector.load %arg7[%c0_70, %c0_71] : memref<1x128xf32, #tpu.memory_space<vmem>>, vector<1x128xf32>
    %195 = vector.broadcast %194 : vector<1x128xf32> to vector<8x128xf32>
    %196 = arith.addf %193, %195 : vector<8x128xf32>
    %c0_72 = arith.constant 0 : index
    %c0_73 = arith.constant 0 : index
    %c0_74 = arith.constant 0 : index
    %197 = vector.load %arg8[%c0_72, %c0_73, %c0_74] : memref<1x8x128xf32, #tpu.memory_space<vmem>>, vector<1x8x128xf32>
    %198 = vector.shape_cast %197 : vector<1x8x128xf32> to vector<8x128xf32>
    %199 = vector.shape_cast %196 : vector<8x128xf32> to vector<1x8x128xf32>
    tpu.vector_store %arg8[%c0_72, %c0_73, %c0_74], %199 {strides = array<i32>} : memref<1x8x128xf32, #tpu.memory_space<vmem>>, vector<1x8x128xf32>,
    return
  }
  func.func @transform_0(%arg0: i32) -> (i32, i32, i32) {
    %c0_i32 = arith.constant 0 : i32
    %c0_i32_0 = arith.constant 0 : i32
    %c0_i32_1 = arith.constant 0 : i32
    return %arg0, %c0_i32, %c0_i32_0 : i32, i32, i32
  }
  func.func @transform_1(%arg0: i32) -> (i32, i32) {
    %c0_i32 = arith.constant 0 : i32
    %c0_i32_0 = arith.constant 0 : i32
    %c0_i32_1 = arith.constant 0 : i32
    return %c0_i32, %c0_i32_0 : i32, i32
  }
  func.func @transform_2(%arg0: i32) -> (i32, i32) {
    %c0_i32 = arith.constant 0 : i32
    %c0_i32_0 = arith.constant 0 : i32
    %c0_i32_1 = arith.constant 0 : i32
    return %c0_i32, %c0_i32_0 : i32, i32
  }
  func.func @transform_3(%arg0: i32) -> (i32, i32) {
    %c0_i32 = arith.constant 0 : i32
    %c0_i32_0 = arith.constant 0 : i32
    %c0_i32_1 = arith.constant 0 : i32
    return %c0_i32, %c0_i32_0 : i32, i32
  }
  func.func @transform_4(%arg0: i32) -> (i32, i32) {
    %c0_i32 = arith.constant 0 : i32
    %c0_i32_0 = arith.constant 0 : i32
    %c0_i32_1 = arith.constant 0 : i32
    return %c0_i32, %c0_i32_0 : i32, i32
  }
  func.func @transform_5(%arg0: i32) -> (i32, i32) {
    %c0_i32 = arith.constant 0 : i32
    %c0_i32_0 = arith.constant 0 : i32
    %c0_i32_1 = arith.constant 0 : i32
    return %c0_i32, %c0_i32_0 : i32, i32
  }
  func.func @transform_6(%arg0: i32) -> (i32, i32) {
    %c0_i32 = arith.constant 0 : i32
    %c0_i32_0 = arith.constant 0 : i32
    %c0_i32_1 = arith.constant 0 : i32
    return %c0_i32, %c0_i32_0 : i32, i32
  }
  func.func @transform_7(%arg0: i32) -> (i32, i32, i32) {
    %c0_i32 = arith.constant 0 : i32
    %c0_i32_0 = arith.constant 0 : i32
    %c0_i32_1 = arith.constant 0 : i32
    return %arg0, %c0_i32, %c0_i32_0 : i32, i32, i32
  }
}

</mosaic_0001>

<llo_original>
// kernel: forward.1
$region0: #{forward.1}
  #allocation0 [shape = 'u32[]', space=smem, size = 0x4, offset = 0x4, fixed_abs, tag = 'smem constant byte address 0x4 - core index']
  #allocation1 [shape = 'u32[72,128]{1,0:T(1,128)}', space=vmem, size = 0x9000, scoped, tag = 'internal scratch']
  %s0 = inlined_call_operand.vmem [shape: f32[2,8,128], index: 0, kind: input, shape index: {}]
  %s1 = inlined_call_operand.hbm [shape: f32[8,24], index: 1, kind: input, shape index: {}]
  %s2 = inlined_call_operand.hbm [shape: f32[8,24], index: 2, kind: input, shape index: {}]
  %s3 = inlined_call_operand.vmem [shape: f32[8,8], index: 3, kind: input, shape index: {}]
  %s4 = inlined_call_operand.vmem [shape: f32[8,1], index: 4, kind: input, shape index: {}]
  %s5 = inlined_call_operand.hbm [shape: f32[512,128], index: 5, kind: input, shape index: {}]
  %s6 = inlined_call_operand.vmem [shape: f32[1,128], index: 6, kind: input, shape index: {}]
  %s7 = inlined_call_operand.vmem [shape: f32[1,8,128], index: 7, kind: output, shape index: {}]
  %s8 = sld [smem:[#allocation0]]
  $region50: #{forward.1} parent=0
    _
  %s10 = ssub.s32 1, %s8
  %s11 = scalar_select 0, %s10, %s8
  $region1: #{forward.1} parent=0
    #allocation2 [shape = 'u8[4096]{0}', space=vmem, size = 0x1000, scoped, tag = 'input window, operand 1, single buffered']
    #allocation3 [shape = 's32[1]{0}', space=sflag, size = 0x4, scoped, tag = 'scoped memory for forward.1']
    #allocation4 [shape = 'u8[4096]{0}', space=vmem, size = 0x1000, scoped, tag = 'input window, operand 2, single buffered']
    #allocation5 [shape = 's32[1]{0}', space=sflag, size = 0x4, scoped, tag = 'scoped memory for forward.1']
    #allocation6 [shape = 'u8[262144]{0}', space=vmem, size = 0x40000, scoped, tag = 'input window, operand 5, single buffered']
    %12 = vsyncpa [#allocation3], 0
    %13 = vsyncpa [#allocation5], 0
    // Predicated region
    $region2: #{forward.1} parent=1 // pred_check
      _
    $region3: #{forward.1} parent=1 // pred_check_branch
      %15 = sbr.rel (0) target = $region5
    $region4: #{forward.1} parent=1 // pred_region
      _
    $region5: #{forward.1} parent=1 // pred_fallthru
      _
    // Predicated region
    $region6: #{forward.1} parent=1 // pred_check
      _
    $region7: #{forward.1} parent=1 // pred_check_branch
      %17 = sbr.rel (0) target = $region9
    $region8: #{forward.1} parent=1 // pred_region
      %19 = vsyncadd [#allocation3], 0
      %s21 = sshll.u32 %s1, 4
      %s22 = int_to_ptr.hbm [resolvable:$true] %s21
      %s23 = sshll.u32 [#allocation2], 4
      %s24 = int_to_ptr.vmem [resolvable:$true] %s23
      %26 = dma.hbm_to_vmem [thread:$0]  %s22, 128, %s24, [#allocation3]
    $region9: #{forward.1} parent=1 // pred_fallthru
      _
    // Predicated region
    $region10: #{forward.1} parent=1 // pred_check
      _
    $region11: #{forward.1} parent=1 // pred_check_branch
      %28 = sbr.rel (0) target = $region13
    $region12: #{forward.1} parent=1 // pred_region
      %30 = vsyncadd [#allocation5], 0
      %s32 = sshll.u32 %s2, 4
      %s33 = int_to_ptr.hbm [resolvable:$true] %s32
      %s34 = sshll.u32 [#allocation4], 4
      %s35 = int_to_ptr.vmem [resolvable:$true] %s34
      %37 = dma.hbm_to_vmem [thread:$0]  %s33, 128, %s35, [#allocation5]
    $region13: #{forward.1} parent=1 // pred_fallthru
      _
    // Predicated region
    $region14: #{forward.1} parent=1 // pred_check
      _
    $region15: #{forward.1} parent=1 // pred_check_branch
      %39 = sbr.rel (0) target = $region17
    $region16: #{forward.1} parent=1 // pred_region
      _
    $region17: #{forward.1} parent=1 // pred_fallthru
      _
    // Predicated region
    $region18: #{forward.1} parent=1 // pred_check
      _
    $region19: #{forward.1} parent=1 // pred_check_branch
      %41 = sbr.rel (0) target = $region21
    $region20: #{forward.1} parent=1 // pred_region
      _
    $region21: #{forward.1} parent=1 // pred_fallthru
      _
    // Predicated region
    $region22: #{forward.1} parent=1 // pred_check
      _
    $region23: #{forward.1} parent=1 // pred_check_branch
      %43 = sbr.rel (0) target = $region25
    $region24: #{forward.1} parent=1 // pred_region
      %45 = vsyncadd [#allocation5], 0
      %s46 = sshll.u32 %s5, 4
      %s47 = int_to_ptr.hbm [resolvable:$true] %s46
      %s48 = sshll.u32 [#allocation6], 4
      %s49 = int_to_ptr.vmem [resolvable:$true] %s48
      %54 = dma.hbm_to_vmem [thread:$0]  %s47, 8192, %s49, [#allocation5], 128, 128, 8
    $region25: #{forward.1} parent=1 // pred_fallthru
      _
    // Predicated region
    $region26: #{forward.1} parent=1 // pred_check
      _
    $region27: #{forward.1} parent=1 // pred_check_branch
      %56 = sbr.rel (0) target = $region29
    $region28: #{forward.1} parent=1 // pred_region
      _
    $region29: #{forward.1} parent=1 // pred_fallthru
      _
    // Predicated region
    $region30: #{forward.1} parent=1 // pred_check
      _
    $region31: #{forward.1} parent=1 // pred_check_branch
      %58 = sbr.rel (0) target = $region33
    $region32: #{forward.1} parent=1 // pred_region
      %60 = dma.done [#allocation3], 128
    $region33: #{forward.1} parent=1 // pred_fallthru
      _
    // Predicated region
    $region34: #{forward.1} parent=1 // pred_check
      _
    $region35: #{forward.1} parent=1 // pred_check_branch
      %62 = sbr.rel (0) target = $region37
    $region36: #{forward.1} parent=1 // pred_region
      %64 = dma.done [#allocation5], 128
    $region37: #{forward.1} parent=1 // pred_fallthru
      _
    // Predicated region
    $region38: #{forward.1} parent=1 // pred_check
      _
    $region39: #{forward.1} parent=1 // pred_check_branch
      %66 = sbr.rel (0) target = $region41
    $region40: #{forward.1} parent=1 // pred_region
      %68 = dma.done [#allocation5], 8192
    $region41: #{forward.1} parent=1 // pred_fallthru
      _
    %v69 = vlaneseq
    %v70 = vand.u32 %v69, 127
    %vm71 = vcmp.lt.s32.totalorder %v70, 16
    %v72 = vld [vmem:[%s0] sm:$0xff]
    %s73 = scalar_lea.vmem %s0, 8
    %v74 = vld [vmem:[%s73] sm:$0xff]
    %v75 = vsel %vm71, 1, 0
    %vm76 = vcmp.eq.s32.totalorder %v75, 1
    %v77 = vsel %vm76, %v72, 0.0
    %78 = vadd.xlane.f32.xlu0 %v77
    %v79 = vpop.xlane.xlu0 %78
    %v80 = vmul.f32 %v79, 0.0625
    %v81 = vsub.f32 %v72, %v80
    %v82 = vsel %vm76, %v81, 0.0
    %v83 = vmul.f32 %v82, %v82
    %84 = vadd.xlane.f32.xlu0 %v83
    %v85 = vpop.xlane.xlu0 %84
    %v86 = vmul.f32 %v85, 0.0625
    %v87 = vadd.f32 %v86, 1e-05
    %v88 = vrsqrt.pop %v87
    %v89 = vmul.f32 %v88, %v87
    %v90 = vmul.f32 %v89, %v88
    %v91 = vmul.f32 0.5, %v90
    %v92 = vsub.f32 1.5, %v91
    %v93 = vmul.f32 %v88, %v92
    %vm94 = vweird.f32 %v87
    %vm95 = vweird.f32 %v88
    %vm96 = vmor %vm94, %vm95
    %v97 = vsel %vm96, %v88, %v93
    %v98 = vmul.f32 %v82, %v97
    %v99 = vmax.f32 %v98, 0.0
    %100 = vrot.lane.b32.xlu0 %v99, 1
    %v101 = vpop.permute.xlu0 %100
    %102 = vrot.lane.b32.xlu0 %v99, 127
    %v103 = vpop.permute.xlu0 %102
    %v104 = vsel %vm76, %v74, 0.0
    %105 = vadd.xlane.f32.xlu0 %v104
    %v106 = vpop.xlane.xlu0 %105
    %v107 = vmul.f32 %v106, 0.0625
    %v108 = vsub.f32 %v74, %v107
    %v109 = vsel %vm76, %v108, 0.0
    %v110 = vmul.f32 %v109, %v109
    %111 = vadd.xlane.f32.xlu0 %v110
    %v112 = vpop.xlane.xlu0 %111
    %v113 = vmul.f32 %v112, 0.0625
    %v114 = vadd.f32 %v113, 1e-05
    %v115 = vrsqrt.pop %v114
    %v116 = vmul.f32 %v115, %v114
    %v117 = vmul.f32 %v116, %v115
    %v118 = vmul.f32 0.5, %v117
    %v119 = vsub.f32 1.5, %v118
    %v120 = vmul.f32 %v115, %v119
    %vm121 = vweird.f32 %v114
    %vm122 = vweird.f32 %v115
    %vm123 = vmor %vm121, %vm122
    %v124 = vsel %vm123, %v115, %v120
    %v125 = vmul.f32 %v109, %v124
    %v126 = vmax.f32 %v125, 0.0
    %127 = vrot.lane.b32.xlu0 %v126, 1
    %v128 = vpop.permute.xlu0 %127
    %129 = vrot.lane.b32.xlu0 %v126, 127
    %v130 = vpop.permute.xlu0 %129
    %v131 = vld [vmem:[#allocation2] sm:$0xff]
    %vm132 = vcmask 195584
    %v134 = vsel %vm132, %v131, 0
    %136 = vmatpush.msra.mxu0 0.0
    %137 = vmatpush.msra.mxu0 0.0
    %138 = vmatpush.msra.mxu0 0.0
    %139 = vmatpush.msra.mxu0 0.0
    %140 = vmatpush.msra.mxu0 0.0
    %141 = vmatpush.msra.mxu0 0.0
    %142 = vmatpush.msra.mxu0 0.0
    %143 = vmatpush.msra.mxu0 0.0
    %144 = vmatpush.msra.mxu0 0.0
    %145 = vmatpush.msra.mxu0 0.0
    %146 = vmatpush.msra.mxu0 0.0
    %147 = vmatpush.msra.mxu0 0.0
    %148 = vmatpush.msra.mxu0 0.0
    %149 = vmatpush.msra.mxu0 %v103
    %150 = vmatpush.msra.mxu0 %v99
    %151 = vmatpush.msra.mxu0 %v101
    %152 = vmatmul.f32.gmra.mxu0 %v134
    %v153 = vpop.f32.mrf.mxu0
    %v154 = vadd.f32 0.0, %v153
    %155 = vdwg.mxu0
    %156 = vmatpush.msra.mxu0 0.0
    %157 = vmatpush.msra.mxu0 0.0
    %158 = vmatpush.msra.mxu0 0.0
    %159 = vmatpush.msra.mxu0 0.0
    %160 = vmatpush.msra.mxu0 0.0
    %161 = vmatpush.msra.mxu0 0.0
    %162 = vmatpush.msra.mxu0 0.0
    %163 = vmatpush.msra.mxu0 0.0
    %164 = vmatpush.msra.mxu0 0.0
    %165 = vmatpush.msra.mxu0 0.0
    %166 = vmatpush.msra.mxu0 0.0
    %167 = vmatpush.msra.mxu0 0.0
    %168 = vmatpush.msra.mxu0 0.0
    %169 = vmatpush.msra.mxu0 %v130
    %170 = vmatpush.msra.mxu0 %v126
    %171 = vmatpush.msra.mxu0 %v128
    %172 = vmatmul.f32.gmra.mxu0 %v134
    %v173 = vpop.f32.mrf.mxu0
    %v174 = vadd.f32 0.0, %v173
    %175 = vdwg.mxu0
    %v176 = vsel %vm76, %v154, 0.0
    %177 = vadd.xlane.f32.xlu0 %v176
    %v178 = vpop.xlane.xlu0 %177
    %v179 = vmul.f32 %v178, 0.0625
    %v180 = vsub.f32 %v154, %v179
    %v181 = vsel %vm76, %v180, 0.0
    %v182 = vmul.f32 %v181, %v181
    %183 = vadd.xlane.f32.xlu0 %v182
    %v184 = vpop.xlane.xlu0 %183
    %v185 = vmul.f32 %v184, 0.0625
    %v186 = vadd.f32 %v185, 1e-05
    %v187 = vrsqrt.pop %v186
    %v188 = vmul.f32 %v187, %v186
    %v189 = vmul.f32 %v188, %v187
    %v190 = vmul.f32 0.5, %v189
    %v191 = vsub.f32 1.5, %v190
    %v192 = vmul.f32 %v187, %v191
    %vm193 = vweird.f32 %v186
    %vm194 = vweird.f32 %v187
    %vm195 = vmor %vm193, %vm194
    %v196 = vsel %vm195, %v187, %v192
    %v197 = vmul.f32 %v181, %v196
    %v198 = vmax.f32 %v197, 0.0
    %199 = vrot.lane.b32.xlu0 %v198, 1
    %v200 = vpop.permute.xlu0 %199
    %201 = vrot.lane.b32.xlu0 %v198, 127
    %v202 = vpop.permute.xlu0 %201
    %v203 = vsel %vm76, %v174, 0.0
    %204 = vadd.xlane.f32.xlu0 %v203
    %v205 = vpop.xlane.xlu0 %204
    %v206 = vmul.f32 %v205, 0.0625
    %v207 = vsub.f32 %v174, %v206
    %v208 = vsel %vm76, %v207, 0.0
    %v209 = vmul.f32 %v208, %v208
    %210 = vadd.xlane.f32.xlu0 %v209
    %v211 = vpop.xlane.xlu0 %210
    %v212 = vmul.f32 %v211, 0.0625
    %v213 = vadd.f32 %v212, 1e-05
    %v214 = vrsqrt.pop %v213
    %v215 = vmul.f32 %v214, %v213
    %v216 = vmul.f32 %v215, %v214
    %v217 = vmul.f32 0.5, %v216
    %v218 = vsub.f32 1.5, %v217
    %v219 = vmul.f32 %v214, %v218
    %vm220 = vweird.f32 %v213
    %vm221 = vweird.f32 %v214
    %vm222 = vmor %vm220, %vm221
    %v223 = vsel %vm222, %v214, %v219
    %v224 = vmul.f32 %v208, %v223
    %v225 = vmax.f32 %v224, 0.0
    %226 = vrot.lane.b32.xlu0 %v225, 1
    %v227 = vpop.permute.xlu0 %226
    %228 = vrot.lane.b32.xlu0 %v225, 127
    %v229 = vpop.permute.xlu0 %228
    %v230 = vld [vmem:[#allocation4] sm:$0xff]
    %v232 = vsel %vm132, %v230, 0
    %234 = vmatpush.msra.mxu0 0.0
    %235 = vmatpush.msra.mxu0 0.0
    %236 = vmatpush.msra.mxu0 0.0
    %237 = vmatpush.msra.mxu0 0.0
    %238 = vmatpush.msra.mxu0 0.0
    %239 = vmatpush.msra.mxu0 0.0
    %240 = vmatpush.msra.mxu0 0.0
    %241 = vmatpush.msra.mxu0 0.0
    %242 = vmatpush.msra.mxu0 0.0
    %243 = vmatpush.msra.mxu0 0.0
    %244 = vmatpush.msra.mxu0 0.0
    %245 = vmatpush.msra.mxu0 0.0
    %246 = vmatpush.msra.mxu0 0.0
    %247 = vmatpush.msra.mxu0 %v202
    %248 = vmatpush.msra.mxu0 %v198
    %249 = vmatpush.msra.mxu0 %v200
    %250 = vmatmul.f32.gmra.mxu0 %v232
    %v251 = vpop.f32.mrf.mxu0
    %v252 = vadd.f32 0.0, %v251
    %253 = vdwg.mxu0
    %254 = vmatpush.msra.mxu0 0.0
    %255 = vmatpush.msra.mxu0 0.0
    %256 = vmatpush.msra.mxu0 0.0
    %257 = vmatpush.msra.mxu0 0.0
    %258 = vmatpush.msra.mxu0 0.0
    %259 = vmatpush.msra.mxu0 0.0
    %260 = vmatpush.msra.mxu0 0.0
    %261 = vmatpush.msra.mxu0 0.0
    %262 = vmatpush.msra.mxu0 0.0
    %263 = vmatpush.msra.mxu0 0.0
    %264 = vmatpush.msra.mxu0 0.0
    %265 = vmatpush.msra.mxu0 0.0
    %266 = vmatpush.msra.mxu0 0.0
    %267 = vmatpush.msra.mxu0 %v229
    %268 = vmatpush.msra.mxu0 %v225
    %269 = vmatpush.msra.mxu0 %v227
    %270 = vmatmul.f32.gmra.mxu0 %v232
    %v271 = vpop.f32.mrf.mxu0
    %v272 = vadd.f32 0.0, %v271
    %273 = vdwg.mxu0
    %v274 = vld [vmem:[%s3] sm:$0xff]
    %v275 = vld [vmem:[%s4] sm:$0xff]
    %277 = vset.pattern.permute.xlu0 0
    %278 = vperm.xlu0 %277, %v275
    %v279 = vpop.permute.xlu0 %278
    %vm281 = vcmask 64512
    %v283 = vsel %vm281, %v274, 0
    %285 = vmatpush.msra.mxu0 0.0
    %286 = vmatpush.msra.mxu0 0.0
    %287 = vmatpush.msra.mxu0 0.0
    %288 = vmatpush.msra.mxu0 0.0
    %289 = vmatpush.msra.mxu0 0.0
    %290 = vmatpush.msra.mxu0 0.0
    %291 = vmatpush.msra.mxu0 0.0
    %292 = vmatpush.msra.mxu0 0.0
    %293 = vmatpush.msra.mxu0 0.0
    %294 = vmatpush.msra.mxu0 0.0
    %295 = vmatpush.msra.mxu0 0.0
    %296 = vmatpush.msra.mxu0 0.0
    %297 = vmatpush.msra.mxu0 0.0
    %298 = vmatpush.msra.mxu0 0.0
    %299 = vmatpush.msra.mxu0 0.0
    %300 = vmatpush.msra.mxu0 %v252
    %301 = vmatmul.f32.gmra.mxu0 %v283
    %v302 = vpop.f32.mrf.mxu0
    %v303 = vadd.f32 %v279, %v302
    %304 = vdwg.mxu0
    %305 = vmatpush.msra.mxu0 0.0
    %306 = vmatpush.msra.mxu0 0.0
    %307 = vmatpush.msra.mxu0 0.0
    %308 = vmatpush.msra.mxu0 0.0
    %309 = vmatpush.msra.mxu0 0.0
    %310 = vmatpush.msra.mxu0 0.0
    %311 = vmatpush.msra.mxu0 0.0
    %312 = vmatpush.msra.mxu0 0.0
    %313 = vmatpush.msra.mxu0 0.0
    %314 = vmatpush.msra.mxu0 0.0
    %315 = vmatpush.msra.mxu0 0.0
    %316 = vmatpush.msra.mxu0 0.0
    %317 = vmatpush.msra.mxu0 0.0
    %318 = vmatpush.msra.mxu0 0.0
    %319 = vmatpush.msra.mxu0 0.0
    %320 = vmatpush.msra.mxu0 %v272
    %321 = vmatmul.f32.gmra.mxu0 %v283
    %v322 = vpop.f32.mrf.mxu0
    %v323 = vadd.f32 %v279, %v322
    %324 = vdwg.mxu0
    %v325 = vmul.f32 %v303, 0.70710677
    %v326 = vmul.f32 %v323, 0.70710677
    %v327 = vand.u32 2147483647, %v325
    %v328 = vand.u32 2147483647, %v326
    %v329 = vmul.f32 %v327, 0.3275911
    %v330 = vmul.f32 %v328, 0.3275911
    %v331 = vadd.f32 %v329, 1.0
    %v332 = vadd.f32 %v330, 1.0
    %v333 = vrcp.pop %v331
    %v334 = vrcp.pop %v332
    %v335 = vmul.f32 %v333, 1.0614054
    %v336 = vmul.f32 %v334, 1.0614054
    %v337 = vsub.f32 %v335, 1.4531521
    %v338 = vsub.f32 %v336, 1.4531521
    %v339 = vmul.f32 %v337, %v333
    %v340 = vmul.f32 %v338, %v334
    %v341 = vadd.f32 %v339, 1.4214138
    %v342 = vadd.f32 %v340, 1.4214138
    %v343 = vmul.f32 %v341, %v333
    %v344 = vmul.f32 %v342, %v334
    %v345 = vsub.f32 %v343, 0.28449672
    %v346 = vsub.f32 %v344, 0.28449672
    %v347 = vmul.f32 %v345, %v333
    %v348 = vmul.f32 %v346, %v334
    %v349 = vadd.f32 %v347, 0.2548296
    %v350 = vadd.f32 %v348, 0.2548296
    %v351 = vmul.f32 %v349, %v333
    %v352 = vmul.f32 %v350, %v334
    %v353 = vsub.f32 0.0, %v327
    %v354 = vsub.f32 0.0, %v328
    %v355 = vmul.f32 %v353, %v327
    %v356 = vmul.f32 %v354, %v328
    %v357 = vmul.f32 %v355, 1.442695
    %v358 = vpow.pop %v357
    %v359 = vmul.f32 %v356, 1.442695
    %v360 = vpow.pop %v359
    %v361 = vmul.f32 %v351, %v358
    %v362 = vmul.f32 %v352, %v360
    %v363 = vsub.f32 1.0, %v361
    %v364 = vsub.f32 1.0, %v362
    %vm365 = vcmp.ge.f32.partialorder %v325, 0.0
    %vm366 = vcmp.ge.f32.partialorder %v326, 0.0
    %v367 = vsub.f32 0.0, %v363
    %v368 = vsub.f32 0.0, %v364
    %v369 = vsel %vm365, %v363, %v367
    %v370 = vsel %vm366, %v364, %v368
    %v371 = vmul.f32 %v303, 0.5
    %v372 = vmul.f32 %v323, 0.5
    %v373 = vadd.f32 %v369, 1.0
    %v374 = vadd.f32 %v370, 1.0
    %v375 = vmul.f32 %v371, %v373
    %v376 = vmul.f32 %v372, %v374
    %v378 = vrot.slane %v375, 1
    %v380 = vrot.slane %v375, 2
    %v382 = vrot.slane %v375, 3
    %v385 = vrot.slane %v376, 1
    %v386 = vrot.slane %v376, 2
    %v387 = vrot.slane %v376, 3
    %v388 = vrot.slane %v376, 7
    %v389 = vrot.slane %v385, 7
    %v390 = vrot.slane %v386, 7
    %v391 = vrot.slane %v387, 7
    %vm396 = vcmask 1040384
    %v397 = vsel %vm396, %v375, %v388
    %v398 = vsel %vm396, %v378, %v389
    %v399 = vsel %vm396, %v380, %v390
    %v400 = vsel %vm396, %v382, %v391
    %vm401 = vcmask 1041408
    %v402 = vsel %vm401, %v397, 0.0
    %v403 = vsel %vm401, %v398, 0.0
    %v404 = vsel %vm401, %v399, 0.0
    %v405 = vsel %vm401, %v400, 0.0
    %v406 = vld [vmem:[#allocation6] sm:$0xff]
    %v407 = vld [vmem:[#allocation6 + $0x8] sm:$0xff]
    %v408 = vld [vmem:[#allocation6 + $0x10] sm:$0xff]
    %v409 = vld [vmem:[#allocation6 + $0x18] sm:$0xff]
    %v410 = vld [vmem:[#allocation6 + $0x20] sm:$0xff]
    %v411 = vld [vmem:[#allocation6 + $0x28] sm:$0xff]
    %v412 = vld [vmem:[#allocation6 + $0x30] sm:$0xff]
    %v413 = vld [vmem:[#allocation6 + $0x38] sm:$0xff]
    %v414 = vld [vmem:[#allocation6 + $0x40] sm:$0xff]
    %v415 = vld [vmem:[#allocation6 + $0x48] sm:$0xff]
    %v416 = vld [vmem:[#allocation6 + $0x50] sm:$0xff]
    %v417 = vld [vmem:[#allocation6 + $0x58] sm:$0xff]
    %v418 = vld [vmem:[#allocation6 + $0x60] sm:$0xff]
    %v419 = vld [vmem:[#allocation6 + $0x68] sm:$0xff]
    %v420 = vld [vmem:[#allocation6 + $0x70] sm:$0xff]
    %v421 = vld [vmem:[#allocation6 + $0x78] sm:$0xff]
    %v422 = vld [vmem:[#allocation6 + $0x80] sm:$0xff]
    %v423 = vld [vmem:[#allocation6 + $0x88] sm:$0xff]
    %v424 = vld [vmem:[#allocation6 + $0x90] sm:$0xff]
    %v425 = vld [vmem:[#allocation6 + $0x98] sm:$0xff]
    %v426 = vld [vmem:[#allocation6 + $0xa0] sm:$0xff]
    %v427 = vld [vmem:[#allocation6 + $0xa8] sm:$0xff]
    %v428 = vld [vmem:[#allocation6 + $0xb0] sm:$0xff]
    %v429 = vld [vmem:[#allocation6 + $0xb8] sm:$0xff]
    %v430 = vld [vmem:[#allocation6 + $0xc0] sm:$0xff]
    %v431 = vld [vmem:[#allocation6 + $0xc8] sm:$0xff]
    %v432 = vld [vmem:[#allocation6 + $0xd0] sm:$0xff]
    %v433 = vld [vmem:[#allocation6 + $0xd8] sm:$0xff]
    %v434 = vld [vmem:[#allocation6 + $0xe0] sm:$0xff]
    %v435 = vld [vmem:[#allocation6 + $0xe8] sm:$0xff]
    %v436 = vld [vmem:[#allocation6 + $0xf0] sm:$0xff]
    %v437 = vld [vmem:[#allocation6 + $0xf8] sm:$0xff]
    %v438 = vld [vmem:[#allocation6 + $0x100] sm:$0xff]
    %v439 = vld [vmem:[#allocation6 + $0x108] sm:$0xff]
    %v440 = vld [vmem:[#allocation6 + $0x110] sm:$0xff]
    %v441 = vld [vmem:[#allocation6 + $0x118] sm:$0xff]
    %v442 = vld [vmem:[#allocation6 + $0x120] sm:$0xff]
    %v443 = vld [vmem:[#allocation6 + $0x128] sm:$0xff]
    %v444 = vld [vmem:[#allocation6 + $0x130] sm:$0xff]
    %v445 = vld [vmem:[#allocation6 + $0x138] sm:$0xff]
    %v446 = vld [vmem:[#allocation6 + $0x140] sm:$0xff]
    %v447 = vld [vmem:[#allocation6 + $0x148] sm:$0xff]
    %v448 = vld [vmem:[#allocation6 + $0x150] sm:$0xff]
    %v449 = vld [vmem:[#allocation6 + $0x158] sm:$0xff]
    %v450 = vld [vmem:[#allocation6 + $0x160] sm:$0xff]
    %v451 = vld [vmem:[#allocation6 + $0x168] sm:$0xff]
    %v452 = vld [vmem:[#allocation6 + $0x170] sm:$0xff]
    %v453 = vld [vmem:[#allocation6 + $0x178] sm:$0xff]
    %v454 = vld [vmem:[#allocation6 + $0x180] sm:$0xff]
    %v455 = vld [vmem:[#allocation6 + $0x188] sm:$0xff]
    %v456 = vld [vmem:[#allocation6 + $0x190] sm:$0xff]
    %v457 = vld [vmem:[#allocation6 + $0x198] sm:$0xff]
    %v458 = vld [vmem:[#allocation6 + $0x1a0] sm:$0xff]
    %v459 = vld [vmem:[#allocation6 + $0x1a8] sm:$0xff]
    %v460 = vld [vmem:[#allocation6 + $0x1b0] sm:$0xff]
    %v461 = vld [vmem:[#allocation6 + $0x1b8] sm:$0xff]
    %v462 = vld [vmem:[#allocation6 + $0x1c0] sm:$0xff]
    %v463 = vld [vmem:[#allocation6 + $0x1c8] sm:$0xff]
    %v464 = vld [vmem:[#allocation6 + $0x1d0] sm:$0xff]
    %v465 = vld [vmem:[#allocation6 + $0x1d8] sm:$0xff]
    %v466 = vld [vmem:[#allocation6 + $0x1e0] sm:$0xff]
    %v467 = vld [vmem:[#allocation6 + $0x1e8] sm:$0xff]
    %v468 = vld [vmem:[#allocation6 + $0x1f0] sm:$0xff]
    %v469 = vld [vmem:[#allocation6 + $0x1f8] sm:$0xff]
    %v470 = vld [vmem:[%s6] sm:$0x1]
    %v472 = vperm.slane %v470, 0
    %474 = vmatpush.msra.mxu0 %v421
    %475 = vmatpush.msra.mxu0 %v420
    %476 = vmatpush.msra.mxu0 %v419
    %477 = vmatpush.msra.mxu0 %v418
    %478 = vmatpush.msra.mxu0 %v417
    %479 = vmatpush.msra.mxu0 %v416
    %480 = vmatpush.msra.mxu0 %v415
    %481 = vmatpush.msra.mxu0 %v414
    %482 = vmatpush.msra.mxu0 %v413
    %483 = vmatpush.msra.mxu0 %v412
    %484 = vmatpush.msra.mxu0 %v411
    %485 = vmatpush.msra.mxu0 %v410
    %486 = vmatpush.msra.mxu0 %v409
    %487 = vmatpush.msra.mxu0 %v408
    %488 = vmatpush.msra.mxu0 %v407
    %489 = vmatpush.msra.mxu0 %v406
    %490 = vmatmul.f32.gmra.mxu0 %v402
    %v491 = vpop.f32.mrf.mxu0
    %v492 = vadd.f32 %v472, %v491
    %493 = vdwg.mxu0
    %494 = vmatpush.msra.mxu0 %v437
    %495 = vmatpush.msra.mxu0 %v436
    %496 = vmatpush.msra.mxu0 %v435
    %497 = vmatpush.msra.mxu0 %v434
    %498 = vmatpush.msra.mxu0 %v433
    %499 = vmatpush.msra.mxu0 %v432
    %500 = vmatpush.msra.mxu0 %v431
    %501 = vmatpush.msra.mxu0 %v430
    %502 = vmatpush.msra.mxu0 %v429
    %503 = vmatpush.msra.mxu0 %v428
    %504 = vmatpush.msra.mxu0 %v427
    %505 = vmatpush.msra.mxu0 %v426
    %506 = vmatpush.msra.mxu0 %v425
    %507 = vmatpush.msra.mxu0 %v424
    %508 = vmatpush.msra.mxu0 %v423
    %509 = vmatpush.msra.mxu0 %v422
    %510 = vmatmul.f32.gmra.mxu0 %v403
    %v511 = vpop.f32.mrf.mxu0
    %v512 = vadd.f32 %v492, %v511
    %513 = vdwg.mxu0
    %514 = vmatpush.msra.mxu0 %v453
    %515 = vmatpush.msra.mxu0 %v452
    %516 = vmatpush.msra.mxu0 %v451
    %517 = vmatpush.msra.mxu0 %v450
    %518 = vmatpush.msra.mxu0 %v449
    %519 = vmatpush.msra.mxu0 %v448
    %520 = vmatpush.msra.mxu0 %v447
    %521 = vmatpush.msra.mxu0 %v446
    %522 = vmatpush.msra.mxu0 %v445
    %523 = vmatpush.msra.mxu0 %v444
    %524 = vmatpush.msra.mxu0 %v443
    %525 = vmatpush.msra.mxu0 %v442
    %526 = vmatpush.msra.mxu0 %v441
    %527 = vmatpush.msra.mxu0 %v440
    %528 = vmatpush.msra.mxu0 %v439
    %529 = vmatpush.msra.mxu0 %v438
    %530 = vmatmul.f32.gmra.mxu0 %v404
    %v531 = vpop.f32.mrf.mxu0
    %v532 = vadd.f32 %v512, %v531
    %533 = vdwg.mxu0
    %534 = vmatpush.msra.mxu0 %v469
    %535 = vmatpush.msra.mxu0 %v468
    %536 = vmatpush.msra.mxu0 %v467
    %537 = vmatpush.msra.mxu0 %v466
    %538 = vmatpush.msra.mxu0 %v465
    %539 = vmatpush.msra.mxu0 %v464
    %540 = vmatpush.msra.mxu0 %v463
    %541 = vmatpush.msra.mxu0 %v462
    %542 = vmatpush.msra.mxu0 %v461
    %543 = vmatpush.msra.mxu0 %v460
    %544 = vmatpush.msra.mxu0 %v459
    %545 = vmatpush.msra.mxu0 %v458
    %546 = vmatpush.msra.mxu0 %v457
    %547 = vmatpush.msra.mxu0 %v456
    %548 = vmatpush.msra.mxu0 %v455
    %549 = vmatpush.msra.mxu0 %v454
    %550 = vmatmul.f32.gmra.mxu0 %v405
    %v551 = vpop.f32.mrf.mxu0
    %v552 = vadd.f32 %v532, %v551
    %553 = vdwg.mxu0
    %554 = vst [vmem:[%s7] sm:$0xff] %v552
    // Predicated region
    $region42: #{forward.1} parent=1 // pred_check
      _
    $region43: #{forward.1} parent=1 // pred_check_branch
      %556 = sbr.rel (0) target = $region45
    $region44: #{forward.1} parent=1 // pred_region
      _
    $region45: #{forward.1} parent=1 // pred_fallthru
      _
    // Predicated region
    $region46: #{forward.1} parent=1 // pred_check
      _
    $region47: #{forward.1} parent=1 // pred_check_branch
      %558 = sbr.rel (0) target = $region49
    $region48: #{forward.1} parent=1 // pred_region
      _
    $region49: #{forward.1} parent=1 // pred_fallthru
      _
    %559 = vsyncpa [#allocation3], 1
    %560 = vsyncpa [#allocation5], 1

</llo_original>
